<compile_context>
chip_gen: v5e
topology: v5e:2x2
jax: 0.10.0
libtpu: 0.0.40
codegen_flags: <defaults>
</compile_context>

<pallas_src>
import jax
import jax.numpy as jnp
from jax.experimental import pallas as pl
from jax.experimental.pallas import tpu as pltpu


# ----------------------------------------------------------------------------
# One-time parameter packing (done outside jit / outside the forward path).
# ----------------------------------------------------------------------------
_PARAM_ORDER = ("exp1", "exp2", "ess1", "ess2", "omics",
                "gcn1", "gcn2", "pred1", "pred2")
_ROW_ALIGN = 16  # keep every block's start row aligned for bf16 sublane packing


def pack_params(params):
    """Pack all weights into one bf16 slab and all biases into one f32 slab.

    Returns (wslab_bf16 [R, Wmax], bslab_f32 [n, Wmax], offs, brow) where
    offs[name] = (row_offset, n_rows, n_cols) -- static Python ints used for
    zero-cost ref slicing inside the kernel.
    """
    ws = [params[k][0] for k in _PARAM_ORDER]
    bs = [params[k][1] for k in _PARAM_ORDER]
    wmax = max(int(w.shape[1]) for w in ws)

    offs, blocks, r = {}, [], 0
    for k, w in zip(_PARAM_ORDER, ws):
        nr, nc = int(w.shape[0]), int(w.shape[1])
        nr_pad = -(-nr // _ROW_ALIGN) * _ROW_ALIGN
        offs[k] = (r, nr, nc)
        blocks.append(jnp.pad(w, ((0, nr_pad - nr), (0, wmax - nc))))
        r += nr_pad
    wslab = jnp.concatenate(blocks, axis=0).astype(jnp.bfloat16)

    brow = {k: i for i, k in enumerate(_PARAM_ORDER)}
    bslab = jnp.stack(
        [jnp.pad(b, (0, wmax - int(b.shape[0]))) for b in bs], axis=0
    ).astype(jnp.float32)
    return wslab, bslab, offs, brow


# ----------------------------------------------------------------------------
# Fused forward kernel: everything in one VMEM-resident pallas_call.
# ----------------------------------------------------------------------------
def _make_kernel(B, H, N, offs, brow):
    f32 = jnp.float32
    bf16 = jnp.bfloat16

    def kernel(exp_ref, ess_ref, om1_ref, om2_ref, x_ref, a_ref,
               i1_ref, i2_ref, w_ref, b_ref, out_ref):
        def w(name):
            r0, nr, nc = offs[name]
            return w_ref[r0:r0 + nr, 0:nc]                 # bf16, static slice

        def bias(name):
            nc = offs[name][2]
            i = brow[name]
            return b_ref[i:i + 1, 0:nc]                    # f32, [1, nc]

        def dense(x, name, relu=True):
            y = (jnp.dot(x.astype(bf16), w(name), preferred_element_type=f32)
                 + bias(name))
            return jnp.maximum(y, 0.0) if relu else y

        # --- cell encoders: Linear->ReLU->Linear->ReLU ---
        e = dense(dense(exp_ref[...], "exp1"), "exp2")     # [B, H/2]
        s = dense(dense(ess_ref[...], "ess1"), "ess2")     # [B, H/2]

        # --- shared-weight omics encoder: one [2B, D] matmul ---
        om = jnp.concatenate([om1_ref[...], om2_ref[...]], axis=0)   # [2B, D] f32
        o = dense(om, "omics")                                       # [2B, H]
        o1, o2 = o[:B], o[B:]

        # --- GCN: two layers fused, A_hat loaded once, h1 never leaves VMEM ---
        a = a_ref[...]                                               # bf16 [N, N]
        xw1 = jnp.dot(x_ref[...], w("gcn1"), preferred_element_type=f32)
        h1 = jnp.maximum(
            jnp.dot(a, xw1.astype(bf16), preferred_element_type=f32) + bias("gcn1"),
            0.0)
        xw2 = jnp.dot(h1.astype(bf16), w("gcn2"), preferred_element_type=f32)
        h2 = jnp.maximum(
            jnp.dot(a, xw2.astype(bf16), preferred_element_type=f32) + bias("gcn2"),
            0.0)

        # --- merged gene gather: one [2B,N] one-hot, one MXU push ---
        idx = jnp.concatenate([i1_ref[...], i2_ref[...]], axis=0)    # [2B, 1] i32
        iota_n = jax.lax.broadcasted_iota(jnp.int32, (2 * B, N), 1)
        oh = (idx == iota_n).astype(bf16)                            # exact 0/1
        g = jnp.dot(oh, h2.astype(bf16), preferred_element_type=f32)  # [2B, H]
        g1, g2 = g[:B], g[B:]

        # --- predictor L1: single K=5H matmul on the concat activation row ---
        enc = jnp.concatenate([o1, o2, g1, g2, e, s], axis=1)        # [B, 5H] f32
        h = jnp.maximum(
            jnp.dot(enc.astype(bf16), w("pred1"), preferred_element_type=f32)
            + bias("pred1"), 0.0)
        # Dropout(p=0.5): eval mode -> identity.

        out = (jnp.dot(h.astype(bf16), w("pred2"), preferred_element_type=f32)
               + bias("pred2"))
        out_ref[...] = out.astype(out_ref.dtype)

    return kernel


def fused_forward(offs, brow, cell_exp, cell_ess, omics1, omics2,
                  gene1_idx, gene2_idx, node_feats_bf16, a_hat_bf16,
                  wslab, bslab):
    B = cell_exp.shape[0]
    H = offs["omics"][2]
    N = a_hat_bf16.shape[0]

    i1 = gene1_idx.astype(jnp.int32).reshape(B, 1)
    i2 = gene2_idx.astype(jnp.int32).reshape(B, 1)

    operands = (cell_exp, cell_ess, omics1, omics2,
                node_feats_bf16, a_hat_bf16, i1, i2, wslab, bslab)

    vmem = pltpu.MemorySpace.VMEM
    out = pl.pallas_call(
        _make_kernel(B, H, N, offs, brow),
        out_shape=jax.ShapeDtypeStruct((B, 1), jnp.float32),
        in_specs=[pl.BlockSpec(memory_space=vmem)] * len(operands),
        out_specs=pl.BlockSpec(memory_space=vmem),
    )(*operands)
    return out.reshape(-1)


# ----------------------------------------------------------------------------
# Plain-JAX glue (static preprocessing, hoisted out of the per-forward path)
# ----------------------------------------------------------------------------
def normalized_adjacency(edge_index, num_nodes):
    """GCN normalization: D^{-1/2} (A + I) D^{-1/2}, A[dst, src]=1 for edge src->dst."""
    src = edge_index[0]
    dst = edge_index[1]
    a = jnp.zeros((num_nodes, num_nodes), jnp.float32)
    a = a.at[dst, src].set(1.0)
    a = a + jnp.eye(num_nodes, dtype=jnp.float32)
    deg = a.sum(axis=1)
    d_inv_sqrt = jax.lax.rsqrt(jnp.maximum(deg, 1e-12))
    return a * d_inv_sqrt[:, None] * d_inv_sqrt[None, :]


def init_linear_params(key, fan_in, fan_out):
    kw, kb = jax.random.split(key)
    lim = 1.0 / jnp.sqrt(jnp.float32(fan_in))
    w = jax.random.uniform(kw, (fan_in, fan_out), jnp.float32, -lim, lim)
    b = jax.random.uniform(kb, (fan_out,), jnp.float32, -lim, lim)
    return w, b


def init_params(key, *, hidden, exp_dim, ess_dim, omics_dim, node_feat_dim):
    keys = jax.random.split(key, 11)
    p = {}
    # CCLE expression / essentiality encoders: Lazy(H) -> ReLU -> Linear(H, H/2) -> ReLU
    p["exp1"] = init_linear_params(keys[0], exp_dim, hidden)
    p["exp2"] = init_linear_params(keys[1], hidden, hidden // 2)
    p["ess1"] = init_linear_params(keys[2], ess_dim, hidden)
    p["ess2"] = init_linear_params(keys[3], hidden, hidden // 2)
    # specific omics encoder (shared for omics_1 and omics_2): Lazy(H) -> ReLU
    p["omics"] = init_linear_params(keys[4], omics_dim, hidden)
    # GCN(2H, 2H, H)
    p["gcn1"] = init_linear_params(keys[5], node_feat_dim, 2 * hidden)
    p["gcn2"] = init_linear_params(keys[6], 2 * hidden, hidden)
    # predictor: Lazy(H) -> ReLU -> Dropout -> Linear(H, 1)
    combined_dim = 2 * hidden + 2 * hidden + hidden  # omics + network + cell
    p["pred1"] = init_linear_params(keys[7], combined_dim, hidden)
    p["pred2"] = init_linear_params(keys[8], hidden, 1)
    return p


def reference_forward(params, inputs, a_hat, node_feats):
    """Pure-JAX f32 reference (for correctness check)."""
    cell_exp, cell_ess, omics1, omics2, g1, g2 = inputs
    hp = jax.lax.Precision.HIGHEST

    def dense(x, wb, relu=True):
        w, b = wb
        y = jnp.dot(x, w, precision=hp) + b
        return jnp.maximum(y, 0.0) if relu else y

    e = dense(dense(cell_exp, params["exp1"]), params["exp2"])
    s = dense(dense(cell_ess, params["ess1"]), params["ess2"])
    enc_cell = jnp.concatenate([e, s], axis=1)
    o1 = dense(omics1, params["omics"])
    o2 = dense(omics2, params["omics"])
    enc_omics = jnp.concatenate([o1, o2], axis=1)
    w1, b1 = params["gcn1"]
    w2, b2 = params["gcn2"]
    h1 = jnp.maximum(jnp.dot(a_hat, jnp.dot(node_feats, w1, precision=hp),
                             precision=hp) + b1, 0.0)
    h2 = jnp.maximum(jnp.dot(a_hat, jnp.dot(h1, w2, precision=hp),
                             precision=hp) + b2, 0.0)
    enc_net = jnp.concatenate([jnp.take(h2, g1, axis=0),
                               jnp.take(h2, g2, axis=0)], axis=1)
    enc = jnp.concatenate([enc_omics, enc_net, enc_cell], axis=1)
    h = dense(enc, params["pred1"])
    out = dense(h, params["pred2"], relu=False)
    return out.reshape(-1)


# ----------------------------------------------------------------------------
# Example run
# ----------------------------------------------------------------------------
if __name__ == "__main__":
    B = 8            # batch of gene pairs
    H = 32           # hidden_size
    EXP_D = 64       # CCLE expression feature dim
    ESS_D = 64       # CCLE essentiality feature dim
    OMICS_D = 48     # specific-omics feature dim
    NN = 16          # number of graph nodes
    NODE_D = 2 * H   # GCN in_channels = 2 * hidden_size

    key = jax.random.PRNGKey(0)
    k_param, k_exp, k_ess, k_o1, k_o2, k_x, k_g1, k_g2 = jax.random.split(key, 8)

    params = init_params(k_param, hidden=H, exp_dim=EXP_D, ess_dim=ESS_D,
                         omics_dim=OMICS_D, node_feat_dim=NODE_D)

    cell_exp = jax.random.normal(k_exp, (B, EXP_D), jnp.float32)
    cell_ess = jax.random.normal(k_ess, (B, ESS_D), jnp.float32)
    omics1 = jax.random.normal(k_o1, (B, OMICS_D), jnp.float32)
    omics2 = jax.random.normal(k_o2, (B, OMICS_D), jnp.float32)
    node_feats = jax.random.normal(k_x, (NN, NODE_D), jnp.float32)
    gene1_idx = jax.random.randint(k_g1, (B,), 0, NN)
    gene2_idx = jax.random.randint(k_g2, (B,), 0, NN)

    # undirected ring graph (both edge directions), no self loops
    src = jnp.arange(NN, dtype=jnp.int32)
    dst = (src + 1) % NN
    edge_index = jnp.stack(
        [jnp.concatenate([src, dst]), jnp.concatenate([dst, src])], axis=0)

    inputs = (cell_exp, cell_ess, omics1, omics2, gene1_idx, gene2_idx)

    # --- one-time static preprocessing (outside the per-forward path) ---
    a_hat = normalized_adjacency(edge_index, NN)           # static edge_index
    a_hat_bf16 = a_hat.astype(jnp.bfloat16)                # MXU-native input
    node_feats_bf16 = node_feats.astype(jnp.bfloat16)
    wslab, bslab, offs, brow = pack_params(params)         # 2 slabs, static layout

    @jax.jit
    def forward(cell_exp, cell_ess, omics1, omics2, g1i, g2i,
                node_feats_bf16, a_hat_bf16, wslab, bslab):
        return fused_forward(offs, brow, cell_exp, cell_ess, omics1, omics2,
                             g1i, g2i, node_feats_bf16, a_hat_bf16, wslab, bslab)

    out = forward(cell_exp, cell_ess, omics1, omics2, gene1_idx, gene2_idx,
                  node_feats_bf16, a_hat_bf16, wslab, bslab)
    out = jax.block_until_ready(out)

    assert out.shape == (B,) and out.dtype == jnp.float32

    ref = jax.block_until_ready(reference_forward(params, inputs, a_hat, node_feats))
    assert jnp.allclose(out, ref, rtol=5e-2, atol=5e-2), (out, ref)

    print("KERNEL_OK")
</pallas_src>

<mosaic_0001>
module attributes {stable_mosaic.version = 11 : i64} {
  func.func @kernel(%arg0: memref<8x64xf32, #tpu.memory_space<vmem>>, %arg1: memref<8x64xf32, #tpu.memory_space<vmem>>, %arg2: memref<8x48xf32, #tpu.memory_space<vmem>>, %arg3: memref<8x48xf32, #tpu.memory_space<vmem>>, %arg4: memref<16x64xbf16, #tpu.memory_space<vmem>>, %arg5: memref<16x16xbf16, #tpu.memory_space<vmem>>, %arg6: memref<8x1xi32, #tpu.memory_space<vmem>>, %arg7: memref<8x1xi32, #tpu.memory_space<vmem>>, %arg8: memref<560x64xbf16, #tpu.memory_space<vmem>>, %arg9: memref<9x64xf32, #tpu.memory_space<vmem>>, %arg10: memref<8x1xf32, #tpu.memory_space<vmem>>) attributes {dimension_semantics = [], scalar_prefetch = 0 : i64, scratch_operands = 0 : i64, tpu.core_type = #tpu.core_type<tc>} {
    %c0 = arith.constant 0 : index
    %c0_0 = arith.constant 0 : index
    %0 = vector.load %arg0[%c0, %c0_0] : memref<8x64xf32, #tpu.memory_space<vmem>>, vector<8x64xf32>
    %1 = arith.truncf %0 : vector<8x64xf32> to vector<8x64xbf16>
    %c0_1 = arith.constant 0 : index
    %c0_2 = arith.constant 0 : index
    %2 = vector.load %arg8[%c0_1, %c0_2] : memref<560x64xbf16, #tpu.memory_space<vmem>>, vector<64x32xbf16>
    %cst = arith.constant dense<0.000000e+00> : vector<8x32xf32>
    %3 = tpu.matmul %1, %2, %cst {dimension_numbers = #tpu.dot_dimension_numbers<[1], [0], [0], [1], [0, 0, 1, 1], [], []>} : vector<8x64xbf16>, vector<64x32xbf16>, vector<8x32xf32> -> vector<8x32xf32>
    %c0_3 = arith.constant 0 : index
    %c0_4 = arith.constant 0 : index
    %4 = vector.load %arg9[%c0_3, %c0_4] : memref<9x64xf32, #tpu.memory_space<vmem>>, vector<1x32xf32>
    %5 = vector.broadcast %4 : vector<1x32xf32> to vector<8x32xf32>
    %6 = arith.addf %3, %5 : vector<8x32xf32>
    %cst_5 = arith.constant 0.000000e+00 : f32
    %7 = vector.broadcast %cst_5 : f32 to vector<8x32xf32>
    %8 = arith.maximumf %6, %7 : vector<8x32xf32>
    %9 = arith.truncf %8 : vector<8x32xf32> to vector<8x32xbf16>
    %c64 = arith.constant 64 : index
    %c0_6 = arith.constant 0 : index
    %10 = vector.load %arg8[%c64, %c0_6] : memref<560x64xbf16, #tpu.memory_space<vmem>>, vector<32x16xbf16>
    %cst_7 = arith.constant dense<0.000000e+00> : vector<8x16xf32>
    %11 = tpu.matmul %9, %10, %cst_7 {dimension_numbers = #tpu.dot_dimension_numbers<[1], [0], [0], [1], [0, 0, 1, 1], [], []>} : vector<8x32xbf16>, vector<32x16xbf16>, vector<8x16xf32> -> vector<8x16xf32>
    %c1 = arith.constant 1 : index
    %c0_8 = arith.constant 0 : index
    %12 = vector.load %arg9[%c1, %c0_8] : memref<9x64xf32, #tpu.memory_space<vmem>>, vector<1x16xf32>
    %13 = vector.broadcast %12 : vector<1x16xf32> to vector<8x16xf32>
    %14 = arith.addf %11, %13 : vector<8x16xf32>
    %cst_9 = arith.constant 0.000000e+00 : f32
    %15 = vector.broadcast %cst_9 : f32 to vector<8x16xf32>
    %16 = arith.maximumf %14, %15 : vector<8x16xf32>
    %c0_10 = arith.constant 0 : index
    %c0_11 = arith.constant 0 : index
    %17 = vector.load %arg1[%c0_10, %c0_11] : memref<8x64xf32, #tpu.memory_space<vmem>>, vector<8x64xf32>
    %18 = arith.truncf %17 : vector<8x64xf32> to vector<8x64xbf16>
    %c96 = arith.constant 96 : index
    %c0_12 = arith.constant 0 : index
    %19 = vector.load %arg8[%c96, %c0_12] : memref<560x64xbf16, #tpu.memory_space<vmem>>, vector<64x32xbf16>
    %cst_13 = arith.constant dense<0.000000e+00> : vector<8x32xf32>
    %20 = tpu.matmul %18, %19, %cst_13 {dimension_numbers = #tpu.dot_dimension_numbers<[1], [0], [0], [1], [0, 0, 1, 1], [], []>} : vector<8x64xbf16>, vector<64x32xbf16>, vector<8x32xf32> -> vector<8x32xf32>
    %c2 = arith.constant 2 : index
    %c0_14 = arith.constant 0 : index
    %21 = vector.load %arg9[%c2, %c0_14] : memref<9x64xf32, #tpu.memory_space<vmem>>, vector<1x32xf32>
    %22 = vector.broadcast %21 : vector<1x32xf32> to vector<8x32xf32>
    %23 = arith.addf %20, %22 : vector<8x32xf32>
    %cst_15 = arith.constant 0.000000e+00 : f32
    %24 = vector.broadcast %cst_15 : f32 to vector<8x32xf32>
    %25 = arith.maximumf %23, %24 : vector<8x32xf32>
    %26 = arith.truncf %25 : vector<8x32xf32> to vector<8x32xbf16>
    %c160 = arith.constant 160 : index
    %c0_16 = arith.constant 0 : index
    %27 = vector.load %arg8[%c160, %c0_16] : memref<560x64xbf16, #tpu.memory_space<vmem>>, vector<32x16xbf16>
    %cst_17 = arith.constant dense<0.000000e+00> : vector<8x16xf32>
    %28 = tpu.matmul %26, %27, %cst_17 {dimension_numbers = #tpu.dot_dimension_numbers<[1], [0], [0], [1], [0, 0, 1, 1], [], []>} : vector<8x32xbf16>, vector<32x16xbf16>, vector<8x16xf32> -> vector<8x16xf32>
    %c3 = arith.constant 3 : index
    %c0_18 = arith.constant 0 : index
    %29 = vector.load %arg9[%c3, %c0_18] : memref<9x64xf32, #tpu.memory_space<vmem>>, vector<1x16xf32>
    %30 = vector.broadcast %29 : vector<1x16xf32> to vector<8x16xf32>
    %31 = arith.addf %28, %30 : vector<8x16xf32>
    %cst_19 = arith.constant 0.000000e+00 : f32
    %32 = vector.broadcast %cst_19 : f32 to vector<8x16xf32>
    %33 = arith.maximumf %31, %32 : vector<8x16xf32>
    %c0_20 = arith.constant 0 : index
    %c0_21 = arith.constant 0 : index
    %34 = vector.load %arg2[%c0_20, %c0_21] : memref<8x48xf32, #tpu.memory_space<vmem>>, vector<8x48xf32>
    %c0_22 = arith.constant 0 : index
    %c0_23 = arith.constant 0 : index
    %35 = vector.load %arg3[%c0_22, %c0_23] : memref<8x48xf32, #tpu.memory_space<vmem>>, vector<8x48xf32>
    %36 = tpu.concatenate %34, %35 in 0 : vector<8x48xf32>, vector<8x48xf32> -> vector<16x48xf32>
    %37 = arith.truncf %36 : vector<16x48xf32> to vector<16x48xbf16>
    %c192 = arith.constant 192 : index
    %c0_24 = arith.constant 0 : index
    %38 = vector.load %arg8[%c192, %c0_24] : memref<560x64xbf16, #tpu.memory_space<vmem>>, vector<48x32xbf16>
    %cst_25 = arith.constant dense<0.000000e+00> : vector<16x32xf32>
    %39 = tpu.matmul %37, %38, %cst_25 {dimension_numbers = #tpu.dot_dimension_numbers<[1], [0], [0], [1], [0, 0, 1, 1], [], []>} : vector<16x48xbf16>, vector<48x32xbf16>, vector<16x32xf32> -> vector<16x32xf32>
    %c4 = arith.constant 4 : index
    %c0_26 = arith.constant 0 : index
    %40 = vector.load %arg9[%c4, %c0_26] : memref<9x64xf32, #tpu.memory_space<vmem>>, vector<1x32xf32>
    %41 = vector.broadcast %40 : vector<1x32xf32> to vector<16x32xf32>
    %42 = arith.addf %39, %41 : vector<16x32xf32>
    %cst_27 = arith.constant 0.000000e+00 : f32
    %43 = vector.broadcast %cst_27 : f32 to vector<16x32xf32>
    %44 = arith.maximumf %42, %43 : vector<16x32xf32>
    %45 = vector.extract_strided_slice %44 {offsets = [0, 0], sizes = [8, 32], strides = [1, 1]} : vector<16x32xf32> to vector<8x32xf32>
    %46 = vector.extract_strided_slice %44 {offsets = [8, 0], sizes = [8, 32], strides = [1, 1]} : vector<16x32xf32> to vector<8x32xf32>
    %c0_28 = arith.constant 0 : index
    %c0_29 = arith.constant 0 : index
    %47 = vector.load %arg5[%c0_28, %c0_29] : memref<16x16xbf16, #tpu.memory_space<vmem>>, vector<16x16xbf16>
    %c0_30 = arith.constant 0 : index
    %c0_31 = arith.constant 0 : index
    %48 = vector.load %arg4[%c0_30, %c0_31] : memref<16x64xbf16, #tpu.memory_space<vmem>>, vector<16x64xbf16>
    %c240 = arith.constant 240 : index
    %c0_32 = arith.constant 0 : index
    %49 = vector.load %arg8[%c240, %c0_32] : memref<560x64xbf16, #tpu.memory_space<vmem>>, vector<64x64xbf16>
    %cst_33 = arith.constant dense<0.000000e+00> : vector<16x64xf32>
    %50 = tpu.matmul %48, %49, %cst_33 {dimension_numbers = #tpu.dot_dimension_numbers<[1], [0], [0], [1], [0, 0, 1, 1], [], []>} : vector<16x64xbf16>, vector<64x64xbf16>, vector<16x64xf32> -> vector<16x64xf32>
    %51 = arith.truncf %50 : vector<16x64xf32> to vector<16x64xbf16>
    %cst_34 = arith.constant dense<0.000000e+00> : vector<16x64xf32>
    %52 = tpu.matmul %47, %51, %cst_34 {dimension_numbers = #tpu.dot_dimension_numbers<[1], [0], [0], [1], [0, 0, 1, 1], [], []>} : vector<16x16xbf16>, vector<16x64xbf16>, vector<16x64xf32> -> vector<16x64xf32>
    %c5 = arith.constant 5 : index
    %c0_35 = arith.constant 0 : index
    %53 = vector.load %arg9[%c5, %c0_35] : memref<9x64xf32, #tpu.memory_space<vmem>>, vector<1x64xf32>
    %54 = vector.broadcast %53 : vector<1x64xf32> to vector<16x64xf32>
    %55 = arith.addf %52, %54 : vector<16x64xf32>
    %cst_36 = arith.constant 0.000000e+00 : f32
    %56 = vector.broadcast %cst_36 : f32 to vector<16x64xf32>
    %57 = arith.maximumf %55, %56 : vector<16x64xf32>
    %58 = arith.truncf %57 : vector<16x64xf32> to vector<16x64xbf16>
    %c304 = arith.constant 304 : index
    %c0_37 = arith.constant 0 : index
    %59 = vector.load %arg8[%c304, %c0_37] : memref<560x64xbf16, #tpu.memory_space<vmem>>, vector<64x32xbf16>
    %cst_38 = arith.constant dense<0.000000e+00> : vector<16x32xf32>
    %60 = tpu.matmul %58, %59, %cst_38 {dimension_numbers = #tpu.dot_dimension_numbers<[1], [0], [0], [1], [0, 0, 1, 1], [], []>} : vector<16x64xbf16>, vector<64x32xbf16>, vector<16x32xf32> -> vector<16x32xf32>
    %61 = arith.truncf %60 : vector<16x32xf32> to vector<16x32xbf16>
    %cst_39 = arith.constant dense<0.000000e+00> : vector<16x32xf32>
    %62 = tpu.matmul %47, %61, %cst_39 {dimension_numbers = #tpu.dot_dimension_numbers<[1], [0], [0], [1], [0, 0, 1, 1], [], []>} : vector<16x16xbf16>, vector<16x32xbf16>, vector<16x32xf32> -> vector<16x32xf32>
    %c6 = arith.constant 6 : index
    %c0_40 = arith.constant 0 : index
    %63 = vector.load %arg9[%c6, %c0_40] : memref<9x64xf32, #tpu.memory_space<vmem>>, vector<1x32xf32>
    %64 = vector.broadcast %63 : vector<1x32xf32> to vector<16x32xf32>
    %65 = arith.addf %62, %64 : vector<16x32xf32>
    %cst_41 = arith.constant 0.000000e+00 : f32
    %66 = vector.broadcast %cst_41 : f32 to vector<16x32xf32>
    %67 = arith.maximumf %65, %66 : vector<16x32xf32>
    %c0_42 = arith.constant 0 : index
    %c0_43 = arith.constant 0 : index
    %68 = vector.load %arg6[%c0_42, %c0_43] : memref<8x1xi32, #tpu.memory_space<vmem>>, vector<8x1xi32>
    %c0_44 = arith.constant 0 : index
    %c0_45 = arith.constant 0 : index
    %69 = vector.load %arg7[%c0_44, %c0_45] : memref<8x1xi32, #tpu.memory_space<vmem>>, vector<8x1xi32>
    %70 = tpu.concatenate %68, %69 in 0 : vector<8x1xi32>, vector<8x1xi32> -> vector<16x1xi32>
    %71 = tpu.iota {dimensions = array<i32: 1>} : vector<16x16xi32>
    %72 = vector.broadcast %70 : vector<16x1xi32> to vector<16x16xi32>
    %73 = arith.cmpi eq, %72, %71 : vector<16x16xi32>
    %74 = arith.extui %73 : vector<16x16xi1> to vector<16x16xi32>
    %75 = arith.sitofp %74 : vector<16x16xi32> to vector<16x16xf32>
    %76 = arith.truncf %75 : vector<16x16xf32> to vector<16x16xbf16>
    %77 = arith.truncf %67 : vector<16x32xf32> to vector<16x32xbf16>
    %cst_46 = arith.constant dense<0.000000e+00> : vector<16x32xf32>
    %78 = tpu.matmul %76, %77, %cst_46 {dimension_numbers = #tpu.dot_dimension_numbers<[1], [0], [0], [1], [0, 0, 1, 1], [], []>} : vector<16x16xbf16>, vector<16x32xbf16>, vector<16x32xf32> -> vector<16x32xf32>
    %79 = vector.extract_strided_slice %78 {offsets = [0, 0], sizes = [8, 32], strides = [1, 1]} : vector<16x32xf32> to vector<8x32xf32>
    %80 = vector.extract_strided_slice %78 {offsets = [8, 0], sizes = [8, 32], strides = [1, 1]} : vector<16x32xf32> to vector<8x32xf32>
    %81 = tpu.concatenate %45, %46, %79, %80, %16, %33 in 1 : vector<8x32xf32>, vector<8x32xf32>, vector<8x32xf32>, vector<8x32xf32>, vector<8x16xf32>, vector<8x16xf32> -> vector<8x160xf32>
    %82 = arith.truncf %81 : vector<8x160xf32> to vector<8x160xbf16>
    %c368 = arith.constant 368 : index
    %c0_47 = arith.constant 0 : index
    %83 = vector.load %arg8[%c368, %c0_47] : memref<560x64xbf16, #tpu.memory_space<vmem>>, vector<160x32xbf16>
    %cst_48 = arith.constant dense<0.000000e+00> : vector<8x32xf32>
    %84 = tpu.matmul %82, %83, %cst_48 {dimension_numbers = #tpu.dot_dimension_numbers<[1], [0], [0], [1], [0, 0, 1, 1], [], []>} : vector<8x160xbf16>, vector<160x32xbf16>, vector<8x32xf32> -> vector<8x32xf32>
    %c7 = arith.constant 7 : index
    %c0_49 = arith.constant 0 : index
    %85 = vector.load %arg9[%c7, %c0_49] : memref<9x64xf32, #tpu.memory_space<vmem>>, vector<1x32xf32>
    %86 = vector.broadcast %85 : vector<1x32xf32> to vector<8x32xf32>
    %87 = arith.addf %84, %86 : vector<8x32xf32>
    %cst_50 = arith.constant 0.000000e+00 : f32
    %88 = vector.broadcast %cst_50 : f32 to vector<8x32xf32>
    %89 = arith.maximumf %87, %88 : vector<8x32xf32>
    %90 = arith.truncf %89 : vector<8x32xf32> to vector<8x32xbf16>
    %c528 = arith.constant 528 : index
    %c0_51 = arith.constant 0 : index
    %91 = vector.load %arg8[%c528, %c0_51] : memref<560x64xbf16, #tpu.memory_space<vmem>>, vector<32x1xbf16>
    %cst_52 = arith.constant dense<0.000000e+00> : vector<8x1xf32>
    %92 = tpu.matmul %90, %91, %cst_52 {dimension_numbers = #tpu.dot_dimension_numbers<[1], [0], [0], [1], [0, 0, 1, 1], [], []>} : vector<8x32xbf16>, vector<32x1xbf16>, vector<8x1xf32> -> vector<8x1xf32>
    %c8 = arith.constant 8 : index
    %c0_53 = arith.constant 0 : index
    %93 = vector.load %arg9[%c8, %c0_53] : memref<9x64xf32, #tpu.memory_space<vmem>>, vector<1x1xf32>
    %94 = vector.broadcast %93 : vector<1x1xf32> to vector<8x1xf32>
    %95 = arith.addf %92, %94 : vector<8x1xf32>
    %c0_54 = arith.constant 0 : index
    %c0_55 = arith.constant 0 : index
    %96 = vector.load %arg10[%c0_54, %c0_55] : memref<8x1xf32, #tpu.memory_space<vmem>>, vector<8x1xf32>
    tpu.vector_store %arg10[%c0_54, %c0_55], %95 {strides = array<i32>} : memref<8x1xf32, #tpu.memory_space<vmem>>, vector<8x1xf32>,
    return
  }
}

</mosaic_0001>

<llo_original>
// kernel: forward.1
$region0: #{forward.1}
  #allocation0 [shape = 'u32[]', space=smem, size = 0x4, offset = 0x4, fixed_abs, tag = 'smem constant byte address 0x4 - core index']
  #allocation1 [shape = 'u32[72,128]{1,0:T(1,128)}', space=vmem, size = 0x9000, scoped, tag = 'internal scratch']
  %s0 = inlined_call_operand.vmem [shape: f32[8,64], index: 0, kind: input, shape index: {}]
  %s1 = inlined_call_operand.vmem [shape: f32[8,64], index: 1, kind: input, shape index: {}]
  %s2 = inlined_call_operand.vmem [shape: f32[8,48], index: 2, kind: input, shape index: {}]
  %s3 = inlined_call_operand.vmem [shape: f32[8,48], index: 3, kind: input, shape index: {}]
  %s4 = inlined_call_operand.vmem [shape: bf16[16,64], index: 4, kind: input, shape index: {}]
  %s5 = inlined_call_operand.vmem [shape: bf16[16,16], index: 5, kind: input, shape index: {}]
  %s6 = inlined_call_operand.vmem [shape: s32[8,1], index: 6, kind: input, shape index: {}]
  %s7 = inlined_call_operand.vmem [shape: s32[8,1], index: 7, kind: input, shape index: {}]
  %s8 = inlined_call_operand.vmem [shape: bf16[560,64], index: 8, kind: input, shape index: {}]
  %s9 = inlined_call_operand.vmem [shape: f32[9,64], index: 9, kind: input, shape index: {}]
  %s10 = inlined_call_operand.vmem [shape: f32[8,1], index: 10, kind: output, shape index: {}]
  %s11 = sld [smem:[#allocation0]]
  $region50: #{forward.1} parent=0
    _
  %s13 = ssub.s32 1, %s11
  %s14 = scalar_select 0, %s13, %s11
  // Predicated region
  $region2: #{forward.1} parent=0 // pred_check
    _
  $region3: #{forward.1} parent=0 // pred_check_branch
    %16 = sbr.rel (0) target = $region5
  $region4: #{forward.1} parent=0 // pred_region
    _
  $region5: #{forward.1} parent=0 // pred_fallthru
    _
  // Predicated region
  $region6: #{forward.1} parent=0 // pred_check
    _
  $region7: #{forward.1} parent=0 // pred_check_branch
    %18 = sbr.rel (0) target = $region9
  $region8: #{forward.1} parent=0 // pred_region
    _
  $region9: #{forward.1} parent=0 // pred_fallthru
    _
  // Predicated region
  $region10: #{forward.1} parent=0 // pred_check
    _
  $region11: #{forward.1} parent=0 // pred_check_branch
    %20 = sbr.rel (0) target = $region13
  $region12: #{forward.1} parent=0 // pred_region
    _
  $region13: #{forward.1} parent=0 // pred_fallthru
    _
  // Predicated region
  $region14: #{forward.1} parent=0 // pred_check
    _
  $region15: #{forward.1} parent=0 // pred_check_branch
    %22 = sbr.rel (0) target = $region17
  $region16: #{forward.1} parent=0 // pred_region
    _
  $region17: #{forward.1} parent=0 // pred_fallthru
    _
  // Predicated region
  $region18: #{forward.1} parent=0 // pred_check
    _
  $region19: #{forward.1} parent=0 // pred_check_branch
    %24 = sbr.rel (0) target = $region21
  $region20: #{forward.1} parent=0 // pred_region
    _
  $region21: #{forward.1} parent=0 // pred_fallthru
    _
  // Predicated region
  $region22: #{forward.1} parent=0 // pred_check
    _
  $region23: #{forward.1} parent=0 // pred_check_branch
    %26 = sbr.rel (0) target = $region25
  $region24: #{forward.1} parent=0 // pred_region
    _
  $region25: #{forward.1} parent=0 // pred_fallthru
    _
  // Predicated region
  $region26: #{forward.1} parent=0 // pred_check
    _
  $region27: #{forward.1} parent=0 // pred_check_branch
    %28 = sbr.rel (0) target = $region29
  $region28: #{forward.1} parent=0 // pred_region
    _
  $region29: #{forward.1} parent=0 // pred_fallthru
    _
  // Predicated region
  $region30: #{forward.1} parent=0 // pred_check
    _
  $region31: #{forward.1} parent=0 // pred_check_branch
    %30 = sbr.rel (0) target = $region33
  $region32: #{forward.1} parent=0 // pred_region
    _
  $region33: #{forward.1} parent=0 // pred_fallthru
    _
  // Predicated region
  $region34: #{forward.1} parent=0 // pred_check
    _
  $region35: #{forward.1} parent=0 // pred_check_branch
    %32 = sbr.rel (0) target = $region37
  $region36: #{forward.1} parent=0 // pred_region
    _
  $region37: #{forward.1} parent=0 // pred_fallthru
    _
  // Predicated region
  $region38: #{forward.1} parent=0 // pred_check
    _
  $region39: #{forward.1} parent=0 // pred_check_branch
    %34 = sbr.rel (0) target = $region41
  $region40: #{forward.1} parent=0 // pred_region
    _
  $region41: #{forward.1} parent=0 // pred_fallthru
    _
  %v36 = vld [vmem:[%s0] sm:$0xff]
  %v37 = vpack.c.bf16 %v36, %v36
  %v38 = vld [vmem:[%s8] sm:$0xf]
  %v39 = vld [vmem:[%s8 + $0x4] sm:$0xf]
  %v40 = vld [vmem:[%s8 + $0x8] sm:$0xf]
  %v41 = vld [vmem:[%s8 + $0xc] sm:$0xf]
  %v42 = vld [vmem:[%s8 + $0x10] sm:$0xf]
  %v43 = vld [vmem:[%s8 + $0x14] sm:$0xf]
  %v44 = vld [vmem:[%s8 + $0x18] sm:$0xf]
  %v45 = vld [vmem:[%s8 + $0x1c] sm:$0xf]
  %v46 = vld [vmem:[%s9] sm:$0x1]
  %v47 = vperm.slane %v46, 0
  %v56 = vunpack.c.l.b16 %v38
  %v57 = vunpack.c.l.b16 %v39
  %v58 = vunpack.c.l.b16 %v40
  %v59 = vunpack.c.l.b16 %v41
  %v60 = vunpack.c.l.b16 %v42
  %v61 = vunpack.c.l.b16 %v43
  %v62 = vunpack.c.l.b16 %v44
  %v63 = vunpack.c.l.b16 %v45
  %v64 = vpack.c.b16 %v57, %v56
  %v65 = vpack.c.b16 %v59, %v58
  %v66 = vpack.c.b16 %v61, %v60
  %v67 = vpack.c.b16 %v63, %v62
  %vm72 = vcmask 523264
  %v74 = vsel %vm72, %v37, 0
  %76 = vmatpush.bf16.msra.mxu0 0
  %77 = vmatpush.bf16.msra.mxu0 0
  %78 = vmatpush.bf16.msra.mxu0 0
  %79 = vmatpush.bf16.msra.mxu0 0
  %80 = vmatpush.bf16.msra.mxu0 %v67
  %81 = vmatpush.bf16.msra.mxu0 %v66
  %82 = vmatpush.bf16.msra.mxu0 %v65
  %83 = vmatpush.bf16.msra.mxu0 %v64
  %84 = vmatmul.bf16.gmra.mxu0 %v74
  %v85 = vpop.f32.mrf.mxu0
  %v86 = vadd.f32 %v47, %v85
  %v87 = vpop.f32.mrf.mxu0
  %88 = vdwg.mxu0
  %v89 = vmax.f32 %v86, 0.0
  %v90 = vpack.c.bf16 %v89, %v89
  %v91 = vld [vmem:[%s8 + $0x20] sm:$0xf]
  %v92 = vld [vmem:[%s8 + $0x24] sm:$0xf]
  %v93 = vld [vmem:[%s8 + $0x28] sm:$0xf]
  %v94 = vld [vmem:[%s8 + $0x2c] sm:$0xf]
  %v95 = vld [vmem:[%s9 + $0x1] sm:$0x1]
  %v96 = vperm.slane %v95, 0
  %v101 = vunpack.c.l.b16 %v91
  %v102 = vunpack.c.l.b16 %v92
  %v103 = vunpack.c.l.b16 %v93
  %v104 = vunpack.c.l.b16 %v94
  %v105 = vpack.c.b16 %v102, %v101
  %v106 = vpack.c.b16 %v104, %v103
  %vm109 = vcmask 261120
  %v111 = vsel %vm109, %v90, 0
  %113 = vmatpush.bf16.msra.mxu0 0
  %114 = vmatpush.bf16.msra.mxu0 0
  %115 = vmatpush.bf16.msra.mxu0 0
  %116 = vmatpush.bf16.msra.mxu0 0
  %117 = vmatpush.bf16.msra.mxu0 0
  %118 = vmatpush.bf16.msra.mxu0 0
  %119 = vmatpush.bf16.msra.mxu0 %v106
  %120 = vmatpush.bf16.msra.mxu0 %v105
  %121 = vmatmul.bf16.gmra.mxu0 %v111
  %v122 = vpop.f32.mrf.mxu0
  %v123 = vadd.f32 %v96, %v122
  %v124 = vpop.f32.mrf.mxu0
  %125 = vdwg.mxu0
  %v126 = vmax.f32 %v123, 0.0
  %v127 = vld [vmem:[%s1] sm:$0xff]
  %v128 = vpack.c.bf16 %v127, %v127
  %v129 = vld [vmem:[%s8 + $0x30] sm:$0xf]
  %v130 = vld [vmem:[%s8 + $0x34] sm:$0xf]
  %v131 = vld [vmem:[%s8 + $0x38] sm:$0xf]
  %v132 = vld [vmem:[%s8 + $0x3c] sm:$0xf]
  %v133 = vld [vmem:[%s8 + $0x40] sm:$0xf]
  %v134 = vld [vmem:[%s8 + $0x44] sm:$0xf]
  %v135 = vld [vmem:[%s8 + $0x48] sm:$0xf]
  %v136 = vld [vmem:[%s8 + $0x4c] sm:$0xf]
  %v137 = vld [vmem:[%s9 + $0x2] sm:$0x1]
  %v138 = vperm.slane %v137, 0
  %v147 = vunpack.c.l.b16 %v129
  %v148 = vunpack.c.l.b16 %v130
  %v149 = vunpack.c.l.b16 %v131
  %v150 = vunpack.c.l.b16 %v132
  %v151 = vunpack.c.l.b16 %v133
  %v152 = vunpack.c.l.b16 %v134
  %v153 = vunpack.c.l.b16 %v135
  %v154 = vunpack.c.l.b16 %v136
  %v155 = vpack.c.b16 %v148, %v147
  %v156 = vpack.c.b16 %v150, %v149
  %v157 = vpack.c.b16 %v152, %v151
  %v158 = vpack.c.b16 %v154, %v153
  %v164 = vsel %vm72, %v128, 0
  %166 = vmatpush.bf16.msra.mxu0 0
  %167 = vmatpush.bf16.msra.mxu0 0
  %168 = vmatpush.bf16.msra.mxu0 0
  %169 = vmatpush.bf16.msra.mxu0 0
  %170 = vmatpush.bf16.msra.mxu0 %v158
  %171 = vmatpush.bf16.msra.mxu0 %v157
  %172 = vmatpush.bf16.msra.mxu0 %v156
  %173 = vmatpush.bf16.msra.mxu0 %v155
  %174 = vmatmul.bf16.gmra.mxu0 %v164
  %v175 = vpop.f32.mrf.mxu0
  %v176 = vadd.f32 %v138, %v175
  %v177 = vpop.f32.mrf.mxu0
  %178 = vdwg.mxu0
  %v179 = vmax.f32 %v176, 0.0
  %v180 = vpack.c.bf16 %v179, %v179
  %v181 = vld [vmem:[%s8 + $0x50] sm:$0xf]
  %v182 = vld [vmem:[%s8 + $0x54] sm:$0xf]
  %v183 = vld [vmem:[%s8 + $0x58] sm:$0xf]
  %v184 = vld [vmem:[%s8 + $0x5c] sm:$0xf]
  %v185 = vld [vmem:[%s9 + $0x3] sm:$0x1]
  %v186 = vperm.slane %v185, 0
  %v191 = vunpack.c.l.b16 %v181
  %v192 = vunpack.c.l.b16 %v182
  %v193 = vunpack.c.l.b16 %v183
  %v194 = vunpack.c.l.b16 %v184
  %v195 = vpack.c.b16 %v192, %v191
  %v196 = vpack.c.b16 %v194, %v193
  %v200 = vsel %vm109, %v180, 0
  %202 = vmatpush.bf16.msra.mxu0 0
  %203 = vmatpush.bf16.msra.mxu0 0
  %204 = vmatpush.bf16.msra.mxu0 0
  %205 = vmatpush.bf16.msra.mxu0 0
  %206 = vmatpush.bf16.msra.mxu0 0
  %207 = vmatpush.bf16.msra.mxu0 0
  %208 = vmatpush.bf16.msra.mxu0 %v196
  %209 = vmatpush.bf16.msra.mxu0 %v195
  %210 = vmatmul.bf16.gmra.mxu0 %v200
  %v211 = vpop.f32.mrf.mxu0
  %v212 = vadd.f32 %v186, %v211
  %v213 = vpop.f32.mrf.mxu0
  %214 = vdwg.mxu0
  %v215 = vmax.f32 %v212, 0.0
  %v216 = vld [vmem:[%s2] sm:$0xff]
  %v217 = vld [vmem:[%s3] sm:$0xff]
  %v218 = vpack.c.bf16 %v217, %v216
  %v219 = vld [vmem:[%s8 + $0x60] sm:$0xf]
  %v220 = vld [vmem:[%s8 + $0x64] sm:$0xf]
  %v221 = vld [vmem:[%s8 + $0x68] sm:$0xf]
  %v222 = vld [vmem:[%s8 + $0x6c] sm:$0xf]
  %v223 = vld [vmem:[%s8 + $0x70] sm:$0xf]
  %v224 = vld [vmem:[%s8 + $0x74] sm:$0xf]
  %v225 = vld [vmem:[%s9 + $0x4] sm:$0x1]
  %v226 = vperm.slane %v225, 0
  %v233 = vunpack.c.l.b16 %v219
  %v234 = vunpack.c.l.b16 %v220
  %v235 = vunpack.c.l.b16 %v221
  %v236 = vunpack.c.l.b16 %v222
  %v237 = vunpack.c.l.b16 %v223
  %v238 = vunpack.c.l.b16 %v224
  %v239 = vpack.c.b16 %v234, %v233
  %v240 = vpack.c.b16 %v236, %v235
  %v241 = vpack.c.b16 %v238, %v237
  %vm245 = vcmask 392192
  %v247 = vsel %vm245, %v218, 0
  %249 = vmatpush.bf16.msra.mxu0 0
  %250 = vmatpush.bf16.msra.mxu0 0
  %251 = vmatpush.bf16.msra.mxu0 0
  %252 = vmatpush.bf16.msra.mxu0 0
  %253 = vmatpush.bf16.msra.mxu0 0
  %254 = vmatpush.bf16.msra.mxu0 %v241
  %255 = vmatpush.bf16.msra.mxu0 %v240
  %256 = vmatpush.bf16.msra.mxu0 %v239
  %257 = vmatmul.bf16.gmra.mxu0 %v247
  %v258 = vpop.f32.mrf.mxu0
  %v259 = vadd.f32 %v226, %v258
  %v260 = vpop.f32.mrf.mxu0
  %v261 = vadd.f32 %v226, %v260
  %262 = vdwg.mxu0
  %v263 = vmax.f32 %v259, 0.0
  %v264 = vmax.f32 %v261, 0.0
  %v265 = vld [vmem:[%s5] sm:$0xf]
  %v266 = vld [vmem:[%s5 + $0x4] sm:$0xf]
  %v267 = vld [vmem:[%s4] sm:$0xf]
  %v268 = vld [vmem:[%s4 + $0x4] sm:$0xf]
  %v269 = vld [vmem:[%s8 + $0x78] sm:$0xf]
  %v270 = vld [vmem:[%s8 + $0x7c] sm:$0xf]
  %v271 = vld [vmem:[%s8 + $0x80] sm:$0xf]
  %v272 = vld [vmem:[%s8 + $0x84] sm:$0xf]
  %v273 = vld [vmem:[%s8 + $0x88] sm:$0xf]
  %v274 = vld [vmem:[%s8 + $0x8c] sm:$0xf]
  %v275 = vld [vmem:[%s8 + $0x90] sm:$0xf]
  %v276 = vld [vmem:[%s8 + $0x94] sm:$0xf]
  %v279 = vunpack.c.l.b16 %v267
  %v280 = vunpack.c.l.b16 %v268
  %v281 = vpack.c.b16 %v280, %v279
  %v290 = vunpack.c.l.b16 %v269
  %v291 = vunpack.c.l.b16 %v270
  %v292 = vunpack.c.l.b16 %v271
  %v293 = vunpack.c.l.b16 %v272
  %v294 = vunpack.c.l.b16 %v273
  %v295 = vunpack.c.l.b16 %v274
  %v296 = vunpack.c.l.b16 %v275
  %v297 = vunpack.c.l.b16 %v276
  %v298 = vpack.c.b16 %v291, %v290
  %v299 = vpack.c.b16 %v293, %v292
  %v300 = vpack.c.b16 %v295, %v294
  %v301 = vpack.c.b16 %v297, %v296
  %v307 = vsel %vm72, %v281, 0
  %309 = vmatpush.bf16.msra.mxu0 0
  %310 = vmatpush.bf16.msra.mxu0 0
  %311 = vmatpush.bf16.msra.mxu0 0
  %312 = vmatpush.bf16.msra.mxu0 0
  %313 = vmatpush.bf16.msra.mxu0 %v301
  %314 = vmatpush.bf16.msra.mxu0 %v300
  %315 = vmatpush.bf16.msra.mxu0 %v299
  %316 = vmatpush.bf16.msra.mxu0 %v298
  %317 = vmatmul.bf16.gmra.mxu0 %v307
  %v318 = vpop.f32.mrf.mxu0
  %v319 = vadd.f32 0.0, %v318
  %v320 = vpop.f32.mrf.mxu0
  %v321 = vadd.f32 0.0, %v320
  %322 = vdwg.mxu0
  %v323 = vpack.c.bf16 %v321, %v319
  %v324 = vld [vmem:[%s9 + $0x5] sm:$0x1]
  %v325 = vperm.slane %v324, 0
  %v328 = vunpack.c.l.b16 %v265
  %v329 = vunpack.c.l.b16 %v266
  %v330 = vpack.c.b16 %v329, %v328
  %vm331 = vcmask 130048
  %v333 = vsel %vm331, %v330, 0
  %335 = vmatpush.bf16.msra.mxu0 0
  %336 = vmatpush.bf16.msra.mxu0 0
  %337 = vmatpush.bf16.msra.mxu0 0
  %338 = vmatpush.bf16.msra.mxu0 0
  %339 = vmatpush.bf16.msra.mxu0 0
  %340 = vmatpush.bf16.msra.mxu0 0
  %341 = vmatpush.bf16.msra.mxu0 0
  %342 = vmatpush.bf16.msra.mxu0 %v323
  %343 = vmatmul.bf16.gmra.mxu0 %v333
  %v344 = vpop.f32.mrf.mxu0
  %v345 = vadd.f32 %v325, %v344
  %v346 = vpop.f32.mrf.mxu0
  %v347 = vadd.f32 %v325, %v346
  %348 = vdwg.mxu0
  %v349 = vmax.f32 %v345, 0.0
  %v350 = vmax.f32 %v347, 0.0
  %v351 = vpack.c.bf16 %v350, %v349
  %v352 = vld [vmem:[%s8 + $0x98] sm:$0xf]
  %v353 = vld [vmem:[%s8 + $0x9c] sm:$0xf]
  %v354 = vld [vmem:[%s8 + $0xa0] sm:$0xf]
  %v355 = vld [vmem:[%s8 + $0xa4] sm:$0xf]
  %v356 = vld [vmem:[%s8 + $0xa8] sm:$0xf]
  %v357 = vld [vmem:[%s8 + $0xac] sm:$0xf]
  %v358 = vld [vmem:[%s8 + $0xb0] sm:$0xf]
  %v359 = vld [vmem:[%s8 + $0xb4] sm:$0xf]
  %v368 = vunpack.c.l.b16 %v352
  %v369 = vunpack.c.l.b16 %v353
  %v370 = vunpack.c.l.b16 %v354
  %v371 = vunpack.c.l.b16 %v355
  %v372 = vunpack.c.l.b16 %v356
  %v373 = vunpack.c.l.b16 %v357
  %v374 = vunpack.c.l.b16 %v358
  %v375 = vunpack.c.l.b16 %v359
  %v376 = vpack.c.b16 %v369, %v368
  %v377 = vpack.c.b16 %v371, %v370
  %v378 = vpack.c.b16 %v373, %v372
  %v379 = vpack.c.b16 %v375, %v374
  %v385 = vsel %vm72, %v351, 0
  %387 = vmatpush.bf16.msra.mxu0 0
  %388 = vmatpush.bf16.msra.mxu0 0
  %389 = vmatpush.bf16.msra.mxu0 0
  %390 = vmatpush.bf16.msra.mxu0 0
  %391 = vmatpush.bf16.msra.mxu0 %v379
  %392 = vmatpush.bf16.msra.mxu0 %v378
  %393 = vmatpush.bf16.msra.mxu0 %v377
  %394 = vmatpush.bf16.msra.mxu0 %v376
  %395 = vmatmul.bf16.gmra.mxu0 %v385
  %v396 = vpop.f32.mrf.mxu0
  %v397 = vadd.f32 0.0, %v396
  %v398 = vpop.f32.mrf.mxu0
  %v399 = vadd.f32 0.0, %v398
  %400 = vdwg.mxu0
  %v401 = vpack.c.bf16 %v399, %v397
  %v402 = vld [vmem:[%s9 + $0x6] sm:$0x1]
  %v403 = vperm.slane %v402, 0
  %404 = vmatpush.bf16.msra.mxu0 0
  %405 = vmatpush.bf16.msra.mxu0 0
  %406 = vmatpush.bf16.msra.mxu0 0
  %407 = vmatpush.bf16.msra.mxu0 0
  %408 = vmatpush.bf16.msra.mxu0 0
  %409 = vmatpush.bf16.msra.mxu0 0
  %410 = vmatpush.bf16.msra.mxu0 0
  %411 = vmatpush.bf16.msra.mxu0 %v401
  %412 = vmatmul.bf16.gmra.mxu0 %v333
  %v413 = vpop.f32.mrf.mxu0
  %v414 = vadd.f32 %v403, %v413
  %v415 = vpop.f32.mrf.mxu0
  %v416 = vadd.f32 %v403, %v415
  %417 = vdwg.mxu0
  %v418 = vmax.f32 %v414, 0.0
  %v419 = vmax.f32 %v416, 0.0
  %v420 = vld [vmem:[%s6] sm:$0xff]
  %v421 = vld [vmem:[%s7] sm:$0xff]
  %v422 = vlaneseq
  %v423 = vand.u32 %v422, 127
  %424 = vset.pattern.permute.xlu0 0
  %425 = vperm.xlu0 %424, %v420
  %v426 = vpop.permute.xlu0 %425
  %427 = vset.pattern.permute.xlu0 0
  %428 = vperm.xlu0 %427, %v421
  %v429 = vpop.permute.xlu0 %428
  %vm430 = vcmp.eq.s32.totalorder %v426, %v423
  %vm431 = vcmp.eq.s32.totalorder %v429, %v423
  %v432 = vsel %vm430, 1, 0
  %v433 = vsel %vm431, 1, 0
  %v434 = vcvt.s32.f32 %v432
  %v435 = vcvt.s32.f32 %v433
  %v436 = vpack.c.bf16 %v435, %v434
  %v437 = vpack.c.bf16 %v419, %v418
  %v439 = vsel %vm331, %v436, 0
  %441 = vmatpush.bf16.msra.mxu0 0
  %442 = vmatpush.bf16.msra.mxu0 0
  %443 = vmatpush.bf16.msra.mxu0 0
  %444 = vmatpush.bf16.msra.mxu0 0
  %445 = vmatpush.bf16.msra.mxu0 0
  %446 = vmatpush.bf16.msra.mxu0 0
  %447 = vmatpush.bf16.msra.mxu0 0
  %448 = vmatpush.bf16.msra.mxu0 %v437
  %449 = vmatmul.bf16.gmra.mxu0 %v439
  %v450 = vpop.f32.mrf.mxu0
  %v451 = vadd.f32 0.0, %v450
  %v452 = vpop.f32.mrf.mxu0
  %v453 = vadd.f32 0.0, %v452
  %454 = vdwg.mxu0
  %456 = vrot.lane.b32.xlu0 %v264, 32
  %v457 = vpop.permute.xlu0 %456
  %460 = vrot.lane.b32.xlu0 %v451, 64
  %v461 = vpop.permute.xlu0 %460
  %464 = vrot.lane.b32.xlu0 %v453, 96
  %v465 = vpop.permute.xlu0 %464
  %468 = vrot.lane.b32.xlu0 %v215, 16
  %v469 = vpop.permute.xlu0 %468
  %v471 = vsel %vm109, %v263, %v457
  %v472 = vsel %vm72, %v471, %v461
  %vm473 = vcmask 785408
  %v474 = vsel %vm473, %v472, %v465
  %v475 = vsel %vm331, %v126, %v469
  %v476 = vpack.c.bf16 %v474, %v474
  %v477 = vpack.c.bf16 %v475, %v475
  %v478 = vld [vmem:[%s8 + $0xb8] sm:$0xf]
  %v479 = vld [vmem:[%s8 + $0xbc] sm:$0xf]
  %v480 = vld [vmem:[%s8 + $0xc0] sm:$0xf]
  %v481 = vld [vmem:[%s8 + $0xc4] sm:$0xf]
  %v482 = vld [vmem:[%s8 + $0xc8] sm:$0xf]
  %v483 = vld [vmem:[%s8 + $0xcc] sm:$0xf]
  %v484 = vld [vmem:[%s8 + $0xd0] sm:$0xf]
  %v485 = vld [vmem:[%s8 + $0xd4] sm:$0xf]
  %v486 = vld [vmem:[%s8 + $0xd8] sm:$0xf]
  %v487 = vld [vmem:[%s8 + $0xdc] sm:$0xf]
  %v488 = vld [vmem:[%s8 + $0xe0] sm:$0xf]
  %v489 = vld [vmem:[%s8 + $0xe4] sm:$0xf]
  %v490 = vld [vmem:[%s8 + $0xe8] sm:$0xf]
  %v491 = vld [vmem:[%s8 + $0xec] sm:$0xf]
  %v492 = vld [vmem:[%s8 + $0xf0] sm:$0xf]
  %v493 = vld [vmem:[%s8 + $0xf4] sm:$0xf]
  %v494 = vld [vmem:[%s8 + $0xf8] sm:$0xf]
  %v495 = vld [vmem:[%s8 + $0xfc] sm:$0xf]
  %v496 = vld [vmem:[%s8 + $0x100] sm:$0xf]
  %v497 = vld [vmem:[%s8 + $0x104] sm:$0xf]
  %v498 = vld [vmem:[%s9 + $0x7] sm:$0x1]
  %v499 = vperm.slane %v498, 0
  %v520 = vunpack.c.l.b16 %v478
  %v521 = vunpack.c.l.b16 %v479
  %v522 = vunpack.c.l.b16 %v480
  %v523 = vunpack.c.l.b16 %v481
  %v524 = vunpack.c.l.b16 %v482
  %v525 = vunpack.c.l.b16 %v483
  %v526 = vunpack.c.l.b16 %v484
  %v527 = vunpack.c.l.b16 %v485
  %v528 = vunpack.c.l.b16 %v486
  %v529 = vunpack.c.l.b16 %v487
  %v530 = vunpack.c.l.b16 %v488
  %v531 = vunpack.c.l.b16 %v489
  %v532 = vunpack.c.l.b16 %v490
  %v533 = vunpack.c.l.b16 %v491
  %v534 = vunpack.c.l.b16 %v492
  %v535 = vunpack.c.l.b16 %v493
  %v536 = vunpack.c.l.b16 %v494
  %v537 = vunpack.c.l.b16 %v495
  %v538 = vunpack.c.l.b16 %v496
  %v539 = vunpack.c.l.b16 %v497
  %v540 = vpack.c.b16 %v521, %v520
  %v541 = vpack.c.b16 %v523, %v522
  %v542 = vpack.c.b16 %v525, %v524
  %v543 = vpack.c.b16 %v527, %v526
  %v544 = vpack.c.b16 %v529, %v528
  %v545 = vpack.c.b16 %v531, %v530
  %v546 = vpack.c.b16 %v533, %v532
  %v547 = vpack.c.b16 %v535, %v534
  %v548 = vpack.c.b16 %v537, %v536
  %v549 = vpack.c.b16 %v539, %v538
  %v561 = vsel %vm109, %v477, 0
  %563 = vmatpush.bf16.msra.mxu0 %v547
  %564 = vmatpush.bf16.msra.mxu0 %v546
  %565 = vmatpush.bf16.msra.mxu0 %v545
  %566 = vmatpush.bf16.msra.mxu0 %v544
  %567 = vmatpush.bf16.msra.mxu0 %v543
  %568 = vmatpush.bf16.msra.mxu0 %v542
  %569 = vmatpush.bf16.msra.mxu0 %v541
  %570 = vmatpush.bf16.msra.mxu0 %v540
  %571 = vmatmul.bf16.gmra.mxu0 %v476
  %v572 = vpop.f32.mrf.mxu0
  %v573 = vadd.f32 %v499, %v572
  %v574 = vpop.f32.mrf.mxu0
  %575 = vdwg.mxu0
  %576 = vmatpush.bf16.msra.mxu0 0
  %577 = vmatpush.bf16.msra.mxu0 0
  %578 = vmatpush.bf16.msra.mxu0 0
  %579 = vmatpush.bf16.msra.mxu0 0
  %580 = vmatpush.bf16.msra.mxu0 0
  %581 = vmatpush.bf16.msra.mxu0 0
  %582 = vmatpush.bf16.msra.mxu0 %v549
  %583 = vmatpush.bf16.msra.mxu0 %v548
  %584 = vmatmul.bf16.gmra.mxu0 %v561
  %v585 = vpop.f32.mrf.mxu0
  %v586 = vadd.f32 %v573, %v585
  %v587 = vpop.f32.mrf.mxu0
  %588 = vdwg.mxu0
  %v589 = vmax.f32 %v586, 0.0
  %v590 = vpack.c.bf16 %v589, %v589
  %v591 = vld [vmem:[%s8 + $0x108] sm:$0xf]
  %v592 = vld [vmem:[%s8 + $0x10c] sm:$0xf]
  %v593 = vld [vmem:[%s8 + $0x110] sm:$0xf]
  %v594 = vld [vmem:[%s8 + $0x114] sm:$0xf]
  %v595 = vld [vmem:[%s9 + $0x8] sm:$0x1]
  %v596 = vperm.slane %v595, 0
  %v601 = vunpack.c.l.b16 %v591
  %v602 = vunpack.c.l.b16 %v592
  %v603 = vunpack.c.l.b16 %v593
  %v604 = vunpack.c.l.b16 %v594
  %v605 = vpack.c.b16 %v602, %v601
  %v606 = vpack.c.b16 %v604, %v603
  %v610 = vsel %vm109, %v590, 0
  %612 = vmatpush.bf16.msra.mxu0 0
  %613 = vmatpush.bf16.msra.mxu0 0
  %614 = vmatpush.bf16.msra.mxu0 0
  %615 = vmatpush.bf16.msra.mxu0 0
  %616 = vmatpush.bf16.msra.mxu0 0
  %617 = vmatpush.bf16.msra.mxu0 0
  %618 = vmatpush.bf16.msra.mxu0 %v606
  %619 = vmatpush.bf16.msra.mxu0 %v605
  %620 = vmatmul.bf16.gmra.mxu0 %v610
  %v621 = vpop.f32.mrf.mxu0
  %v622 = vadd.f32 %v596, %v621
  %v623 = vpop.f32.mrf.mxu0
  %624 = vdwg.mxu0
  %vm625 = vcmask 7168
  %626 = vst.msk [vmem:[%s10] sm:$0xff] %vm625, %v622
  // Predicated region
  $region42: #{forward.1} parent=0 // pred_check
    _
  $region43: #{forward.1} parent=0 // pred_check_branch
    %628 = sbr.rel (0) target = $region45
  $region44: #{forward.1} parent=0 // pred_region
    _
  $region45: #{forward.1} parent=0 // pred_fallthru
    _
  // Predicated region
  $region46: #{forward.1} parent=0 // pred_check
    _
  $region47: #{forward.1} parent=0 // pred_check_branch
    %630 = sbr.rel (0) target = $region49
  $region48: #{forward.1} parent=0 // pred_region
    _
  $region49: #{forward.1} parent=0 // pred_fallthru
    _

</llo_original>
